<compile_context>
chip_gen: v5e
topology: v5e:2x2
jax: 0.10.0
libtpu: 0.0.40
codegen_flags: <defaults>
</compile_context>

<pallas_src>
import math

import jax
import jax.numpy as jnp
from jax.experimental import pallas as pl
from jax.experimental.pallas import tpu as pltpu


_ROW_ALIGN = 16   # sublane-safe row alignment for f32 and bf16
_LANE = 128


def _round_up(v, m):
    return (v + m - 1) // m * m


def _vmem_budget_bytes():
    """Generation-aware VMEM budget (~75% of physical capacity)."""
    cap = None
    try:
        info = pltpu.get_tpu_info()
        cap = getattr(info, "vmem_capacity_bytes", None)
    except Exception:
        cap = None
    if not cap:
        cap = 64 * 1024 * 1024          # conservative (v7x-sized) fallback
    return int(cap) * 3 // 4


# --------------------------------------------------------------------------- #
# Kernels
# --------------------------------------------------------------------------- #
def _make_single_k_kernel(compute_dtype):
    # Whole K dimension in one block: no accumulator scratch, no finalize copy.
    def kernel(x_ref, wt_ref, b_ref, o_ref):
        acc = jnp.dot(
            x_ref[...].astype(compute_dtype),     # in-kernel cast (VPU filler)
            wt_ref[...],
            preferred_element_type=jnp.float32,
        )
        o_ref[...] = (acc + b_ref[...].astype(jnp.float32)).astype(o_ref.dtype)

    return kernel


def _make_multi_k_kernel(compute_dtype):
    # Blocked K reduction: f32 VMEM accumulator, bias folded into the init.
    def kernel(x_ref, wt_ref, b_ref, o_ref, acc_ref):
        k = pl.program_id(2)

        @pl.when(k == 0)
        def _init():
            acc_ref[...] = jnp.broadcast_to(
                b_ref[...].astype(jnp.float32), acc_ref.shape
            )

        acc_ref[...] += jnp.dot(
            x_ref[...].astype(compute_dtype),
            wt_ref[...],
            preferred_element_type=jnp.float32,
        )

        @pl.when(k == pl.num_programs(2) - 1)
        def _finalize():
            o_ref[...] = acc_ref[...].astype(o_ref.dtype)

    return kernel


# --------------------------------------------------------------------------- #
# Tile planning
# --------------------------------------------------------------------------- #
def _vmem_use(tn, tk, to, x_bytes, wt_bytes, out_bytes, multi_k):
    u = 2 * tn * tk * x_bytes        # x blocks (double-buffered)
    u += 2 * tk * to * wt_bytes      # weight blocks
    u += 2 * to * 4                  # bias blocks
    u += 2 * tn * to * out_bytes     # output blocks
    if multi_k:
        u += tn * to * 4             # f32 accumulator scratch
    return u


def _plan_tiles(n, k_pad, o_pad, x_bytes, wt_bytes, out_bytes, budget):
    """Return (tile_n, tile_k, tile_o); tile_k/tile_o always divide k_pad/o_pad."""
    n_aligned = _round_up(max(n, 1), _ROW_ALIGN)

    def use(tn, tk, to, multi_k):
        return _vmem_use(tn, tk, to, x_bytes, wt_bytes, out_bytes, multi_k)

    tn_cands = sorted(
        {min(n_aligned, 2048)}
        | {t for t in (1024, 512, 256, 128, 64, 32, 16) if t < n_aligned},
        reverse=True,
    )

    # --- Plan A: weight fully resident in VMEM (single K block, single O block):
    #     the weight is DMA'd exactly once for the whole call.
    for tn in tn_cands:
        if use(tn, k_pad, o_pad, False) <= budget:
            if tn >= n_aligned:
                # Degenerate (1, 1) parallel grid -> split rows so both v7x
                # TensorCores get work (no-op when n is too small to split).
                half = _round_up(-(-n // 2), _ROW_ALIGN)
                if half < tn:
                    tn = half
            return tn, k_pad, o_pad

    # --- Plan B: block over K and output columns too (large tile_k preferred
    #     to minimize f32 accumulator read-modify-write passes).
    def divisors(dim, cap):
        ds = [d for d in (2048, 1024, 512, 256, 128) if d <= min(dim, cap) and dim % d == 0]
        return ds or [dim]

    tk_cands = divisors(k_pad, 1024)
    to_cands = divisors(o_pad, 512)
    tn_i = tk_i = to_i = 0
    while True:
        tn, tk, to = tn_cands[tn_i], tk_cands[tk_i], to_cands[to_i]
        if use(tn, tk, to, k_pad // tk > 1) <= budget:
            return tn, tk, to
        if tk_i + 1 < len(tk_cands):
            tk_i += 1
        elif to_i + 1 < len(to_cands):
            to_i += 1
        elif tn_i + 1 < len(tn_cands):
            tn_i += 1
        else:
            return tn, tk, to   # smallest tiles; rely on the compiler limit


# --------------------------------------------------------------------------- #
# Parameter preparation (one-time, at load)
# --------------------------------------------------------------------------- #
def prepare_params(weight, bias, *, compute_dtype=jnp.bfloat16):
    """One-time prep of PyTorch-layout params.

    weight: (out_dim, embed_dim)  -> transposed, lane-padded, cast to compute_dtype.
    bias:   (out_dim,)            -> (1, o_pad) float32.
    """
    out_dim, embed_dim = weight.shape
    k_pad = _round_up(embed_dim, _LANE)
    o_pad = _round_up(out_dim, _LANE)

    wt = jnp.asarray(weight).T.astype(compute_dtype)           # (embed_dim, out_dim)
    if (k_pad, o_pad) != (embed_dim, out_dim):
        wt = jnp.pad(wt, ((0, k_pad - embed_dim), (0, o_pad - out_dim)))

    b2d = jnp.asarray(bias).astype(jnp.float32).reshape(1, out_dim)
    if o_pad != out_dim:
        b2d = jnp.pad(b2d, ((0, 0), (0, o_pad - out_dim)))

    return {
        "wt": wt,
        "bias": b2d,
        "embed_dim": embed_dim,
        "out_dim": out_dim,
        "compute_dtype": compute_dtype,
    }


def init_params(key, embed_dim, num_heads, *, compute_dtype=jnp.bfloat16):
    """xavier_uniform_ weight + zero bias (matches _reset_parameters)."""
    d_k = embed_dim // num_heads
    out_dim = num_heads * d_k
    bound = math.sqrt(6.0 / (embed_dim + out_dim))
    weight = jax.random.uniform(
        key, (out_dim, embed_dim), minval=-bound, maxval=bound, dtype=jnp.float32
    )
    bias = jnp.zeros((out_dim,), dtype=jnp.float32)
    params = prepare_params(weight, bias, compute_dtype=compute_dtype)
    return params, weight, bias


# --------------------------------------------------------------------------- #
# Forward
# --------------------------------------------------------------------------- #
def projection_forward(x, params, num_heads, *, head_major=True, plan_vmem_bytes=None):
    """Projection forward: returns (num_heads, N, d_k) like the PyTorch module.

    Set head_major=False to get (N, num_heads, d_k) and skip the output
    transpose pass when the downstream consumer allows it.
    """
    n, embed_dim = x.shape
    assert embed_dim == params["embed_dim"], (embed_dim, params["embed_dim"])
    out_dim = params["out_dim"]
    assert out_dim % num_heads == 0, (out_dim, num_heads)
    d_k = out_dim // num_heads

    wt = params["wt"]
    b2d = params["bias"]
    compute_dtype = params["compute_dtype"]
    k_pad, o_pad = wt.shape
    out_dtype = x.dtype

    budget = _vmem_budget_bytes()
    plan_budget = budget if plan_vmem_bytes is None else int(plan_vmem_bytes)

    x_bytes = jnp.dtype(x.dtype).itemsize
    wt_bytes = jnp.dtype(wt.dtype).itemsize
    out_bytes = jnp.dtype(out_dtype).itemsize

    tn, tk, to = _plan_tiles(n, k_pad, o_pad, x_bytes, wt_bytes, out_bytes, plan_budget)

    # Per-call padding: only x (the params were padded once at load time).
    n_pad = _round_up(n, tn)
    if (n_pad, k_pad) != (n, embed_dim):
        x = jnp.pad(x, ((0, n_pad - n), (0, k_pad - embed_dim)))

    n_blocks = n_pad // tn
    o_blocks = o_pad // to
    k_blocks = k_pad // tk

    if k_blocks == 1:
        kernel = _make_single_k_kernel(compute_dtype)
        grid = (n_blocks, o_blocks)
        in_specs = [
            pl.BlockSpec((tn, tk), lambda i, j: (i, 0)),
            pl.BlockSpec((tk, to), lambda i, j: (0, j)),
            pl.BlockSpec((1, to), lambda i, j: (0, j)),
        ]
        out_spec = pl.BlockSpec((tn, to), lambda i, j: (i, j))
        scratch = []
        dims = ("parallel", "parallel")
    else:
        kernel = _make_multi_k_kernel(compute_dtype)
        grid = (n_blocks, o_blocks, k_blocks)        # K reduction last
        in_specs = [
            pl.BlockSpec((tn, tk), lambda i, j, k: (i, k)),
            pl.BlockSpec((tk, to), lambda i, j, k: (k, j)),
            pl.BlockSpec((1, to), lambda i, j, k: (0, j)),
        ]
        out_spec = pl.BlockSpec((tn, to), lambda i, j, k: (i, j))
        scratch = [pltpu.VMEM((tn, to), jnp.float32)]
        dims = ("parallel", "parallel", "arbitrary")

    out_padded = pl.pallas_call(
        kernel,
        out_shape=jax.ShapeDtypeStruct((n_pad, o_pad), out_dtype),
        grid_spec=pltpu.PrefetchScalarGridSpec(
            num_scalar_prefetch=0,
            grid=grid,
            in_specs=in_specs,
            out_specs=out_spec,
            scratch_shapes=scratch,
        ),
        compiler_params=pltpu.CompilerParams(
            dimension_semantics=dims,
            vmem_limit_bytes=budget,
        ),
    )(x, wt, b2d)

    out = out_padded[:n, :out_dim]
    out = out.reshape(n, num_heads, d_k)
    if head_major:
        # (N, H, d_k) -> (H, N, d_k): layout glue matching the PyTorch module.
        out = out.transpose(1, 0, 2)
    return out


def _reference(x, weight, bias, num_heads):
    n = x.shape[0]
    out_dim = weight.shape[0]
    d_k = out_dim // num_heads
    out = x @ weight.T + bias
    return out.reshape(n, num_heads, d_k).transpose(1, 0, 2)


if __name__ == "__main__":
    key = jax.random.PRNGKey(0)

    # --- Config A: small shapes consistent with the module (seq=8, embed=32, 4 heads).
    N, EMBED, HEADS = 8, 32, 4
    kx, kw = jax.random.split(key)
    x = jax.random.normal(kx, (N, EMBED), dtype=jnp.float32)

    params_f32, w_raw, b_raw = init_params(kw, EMBED, HEADS, compute_dtype=jnp.float32)
    ref = _reference(x, w_raw, b_raw, HEADS)

    out = jax.block_until_ready(projection_forward(x, params_f32, HEADS))
    assert out.shape == (HEADS, N, EMBED // HEADS), out.shape
    assert jnp.allclose(out, ref, atol=1e-5, rtol=1e-5), "f32 mismatch vs reference"

    params_bf16, _, _ = init_params(kw, EMBED, HEADS)          # default bf16 weight
    out_bf16 = jax.block_until_ready(projection_forward(x, params_bf16, HEADS))
    assert out_bf16.shape == (HEADS, N, EMBED // HEADS)
    assert jnp.allclose(out_bf16, ref, atol=5e-2, rtol=5e-2), "bf16 mismatch"

    # --- Config B: non-128-multiple dims, non-zero bias, multi-block grids.
    N2, EMBED2, HEADS2 = 130, 320, 8
    kx2, kw2, kb2 = jax.random.split(jax.random.PRNGKey(1), 3)
    x2 = jax.random.normal(kx2, (N2, EMBED2), dtype=jnp.float32)
    bound2 = math.sqrt(6.0 / (EMBED2 + EMBED2))
    w2 = jax.random.uniform(kw2, (EMBED2, EMBED2),
                            minval=-bound2, maxval=bound2, dtype=jnp.float32)
    b2 = 0.1 * jax.random.normal(kb2, (EMBED2,), dtype=jnp.float32)
    ref2 = _reference(x2, w2, b2, HEADS2)

    # Resident-weight (single-K) path, f32 compute.
    params2_f32 = prepare_params(w2, b2, compute_dtype=jnp.float32)
    out2 = jax.block_until_ready(projection_forward(x2, params2_f32, HEADS2))
    assert out2.shape == (HEADS2, N2, EMBED2 // HEADS2), out2.shape
    assert jnp.allclose(out2, ref2, atol=1e-3, rtol=1e-3), "resident-weight mismatch"

    # Forced blocked / multi-K accumulator path (tiny planning budget).
    out2_blk = jax.block_until_ready(
        projection_forward(x2, params2_f32, HEADS2, plan_vmem_bytes=300 * 1024)
    )
    assert jnp.allclose(out2_blk, ref2, atol=1e-3, rtol=1e-3), "blocked multi-K mismatch"

    # Default bf16 resident-weight path.
    params2_bf16 = prepare_params(w2, b2)
    out2_bf = jax.block_until_ready(projection_forward(x2, params2_bf16, HEADS2))
    assert jnp.allclose(out2_bf, ref2, atol=5e-2, rtol=5e-2), "bf16 resident mismatch"

    print("KERNEL_OK")
</pallas_src>

<mosaic_0001>
module attributes {stable_mosaic.version = 11 : i64} {
  func.func @kernel(%arg0: i32, %arg1: i32, %arg2: memref<16x128xf32, #tpu.memory_space<vmem>>, %arg3: memref<128x128xf32, #tpu.memory_space<vmem>>, %arg4: memref<1x128xf32, #tpu.memory_space<vmem>>, %arg5: memref<16x128xf32, #tpu.memory_space<vmem>>) attributes {dimension_semantics = [#tpu.dimension_semantics<parallel>, #tpu.dimension_semantics<parallel>], iteration_bounds = array<i64: 1, 1>, scalar_prefetch = 0 : i64, scratch_operands = 0 : i64, tpu.core_type = #tpu.core_type<tc>, window_params = [{transform_indices = @transform_0, window_bounds = array<i64: 16, 128>}, {transform_indices = @transform_1, window_bounds = array<i64: 128, 128>}, {transform_indices = @transform_2, window_bounds = array<i64: 1, 128>}, {transform_indices = @transform_3, window_bounds = array<i64: 16, 128>}]} {
    %c0 = arith.constant 0 : index
    %c0_0 = arith.constant 0 : index
    %0 = vector.load %arg2[%c0, %c0_0] : memref<16x128xf32, #tpu.memory_space<vmem>>, vector<16x128xf32>
    %c0_1 = arith.constant 0 : index
    %c0_2 = arith.constant 0 : index
    %1 = vector.load %arg3[%c0_1, %c0_2] : memref<128x128xf32, #tpu.memory_space<vmem>>, vector<128x128xf32>
    %cst = arith.constant dense<0.000000e+00> : vector<16x128xf32>
    %2 = tpu.matmul %0, %1, %cst {dimension_numbers = #tpu.dot_dimension_numbers<[1], [0], [0], [1], [0, 0, 1, 1], [], []>} : vector<16x128xf32>, vector<128x128xf32>, vector<16x128xf32> -> vector<16x128xf32>
    %c0_3 = arith.constant 0 : index
    %c0_4 = arith.constant 0 : index
    %3 = vector.load %arg4[%c0_3, %c0_4] : memref<1x128xf32, #tpu.memory_space<vmem>>, vector<1x128xf32>
    %4 = vector.broadcast %3 : vector<1x128xf32> to vector<16x128xf32>
    %5 = arith.addf %2, %4 : vector<16x128xf32>
    %c0_5 = arith.constant 0 : index
    %c0_6 = arith.constant 0 : index
    %6 = vector.load %arg5[%c0_5, %c0_6] : memref<16x128xf32, #tpu.memory_space<vmem>>, vector<16x128xf32>
    tpu.vector_store %arg5[%c0_5, %c0_6], %5 {strides = array<i32>} : memref<16x128xf32, #tpu.memory_space<vmem>>, vector<16x128xf32>,
    return
  }
  func.func @transform_0(%arg0: i32, %arg1: i32) -> (i32, i32) {
    %c0_i32 = arith.constant 0 : i32
    %c0_i32_0 = arith.constant 0 : i32
    return %arg0, %c0_i32 : i32, i32
  }
  func.func @transform_1(%arg0: i32, %arg1: i32) -> (i32, i32) {
    %c0_i32 = arith.constant 0 : i32
    %c0_i32_0 = arith.constant 0 : i32
    return %c0_i32, %arg1 : i32, i32
  }
  func.func @transform_2(%arg0: i32, %arg1: i32) -> (i32, i32) {
    %c0_i32 = arith.constant 0 : i32
    %c0_i32_0 = arith.constant 0 : i32
    return %c0_i32, %arg1 : i32, i32
  }
  func.func @transform_3(%arg0: i32, %arg1: i32) -> (i32, i32) {
    %c0_i32 = arith.constant 0 : i32
    return %arg0, %arg1 : i32, i32
  }
}

</mosaic_0001>

<llo_original>
// kernel: tpu_custom_call.1
$region0: #{tpu_custom_call.1}
  #allocation0 [shape = 'u32[]', space=smem, size = 0x4, offset = 0x4, fixed_abs, tag = 'smem constant byte address 0x4 - core index']
  #allocation1 [shape = 'u32[72,128]{1,0:T(1,128)}', space=vmem, size = 0x9000, scoped, tag = 'internal scratch']
  %s0 = inlined_call_operand.hbm [shape: f32[16,128], index: 0, kind: input, shape index: {}]
  %s1 = inlined_call_operand.hbm [shape: f32[128,128], index: 1, kind: input, shape index: {}]
  %s2 = inlined_call_operand.vmem [shape: f32[1,128], index: 2, kind: input, shape index: {}]
  %s3 = inlined_call_operand.hbm [shape: f32[16,128], index: 3, kind: output, shape index: {}]
  %s4 = sld [smem:[#allocation0]]
  $region30: #{tpu_custom_call.1} parent=0
    _
  %s6 = ssub.s32 1, %s4
  %s7 = scalar_select 0, %s6, %s4
  $region1: #{tpu_custom_call.1} parent=0
    #allocation2 [shape = 'u8[8192]{0}', space=vmem, size = 0x2000, scoped, tag = 'input window, operand 0, single buffered']
    #allocation3 [shape = 's32[1]{0}', space=sflag, size = 0x4, scoped, tag = 'scoped memory for tpu_custom_call.1']
    #allocation4 [shape = 's32[1]{0}', space=sflag, size = 0x4, scoped, tag = 'scoped memory for tpu_custom_call.1']
    #allocation5 [shape = 'u8[65536]{0}', space=vmem, size = 0x10000, scoped, tag = 'input window, operand 1, single buffered']
    #allocation6 [shape = 's32[1]{0}', space=sflag, size = 0x4, scoped, tag = 'scoped memory for tpu_custom_call.1']
    #allocation7 [shape = 'u8[8192]{0}', space=vmem, size = 0x2000, scoped, tag = 'output window, operand 0, single buffered']
    %8 = vsyncpa [#allocation3], 0
    %9 = vsyncpa [#allocation6], 0
    %10 = vsyncpa [#allocation4], 0
    // Predicated region
    $region2: #{tpu_custom_call.1} parent=1 // pred_check
      _
    $region3: #{tpu_custom_call.1} parent=1 // pred_check_branch
      %12 = sbr.rel (0) target = $region5
    $region4: #{tpu_custom_call.1} parent=1 // pred_region
      %14 = vsyncadd [#allocation3], 0
      %s15 = sshll.u32 %s0, 4
      %s16 = int_to_ptr.hbm [resolvable:$true] %s15
      %s17 = sshll.u32 [#allocation2], 4
      %s18 = int_to_ptr.vmem [resolvable:$true] %s17
      %23 = dma.hbm_to_vmem [thread:$0]  %s16, 256, %s18, [#allocation3], 128, 128, 8
    $region5: #{tpu_custom_call.1} parent=1 // pred_fallthru
      _
    // Predicated region
    $region6: #{tpu_custom_call.1} parent=1 // pred_check
      _
    $region7: #{tpu_custom_call.1} parent=1 // pred_check_branch
      %25 = sbr.rel (0) target = $region9
    $region8: #{tpu_custom_call.1} parent=1 // pred_region
      %27 = vsyncadd [#allocation6], 0
      %s28 = sshll.u32 %s1, 4
      %s29 = int_to_ptr.hbm [resolvable:$true] %s28
      %s30 = sshll.u32 [#allocation5], 4
      %s31 = int_to_ptr.vmem [resolvable:$true] %s30
      %36 = dma.hbm_to_vmem [thread:$0]  %s29, 2048, %s31, [#allocation6], 128, 128, 8
    $region9: #{tpu_custom_call.1} parent=1 // pred_fallthru
      _
    // Predicated region
    $region10: #{tpu_custom_call.1} parent=1 // pred_check
      _
    $region11: #{tpu_custom_call.1} parent=1 // pred_check_branch
      %38 = sbr.rel (0) target = $region13
    $region12: #{tpu_custom_call.1} parent=1 // pred_region
      _
    $region13: #{tpu_custom_call.1} parent=1 // pred_fallthru
      _
    // Predicated region
    $region14: #{tpu_custom_call.1} parent=1 // pred_check
      _
    $region15: #{tpu_custom_call.1} parent=1 // pred_check_branch
      %40 = sbr.rel (0) target = $region17
    $region16: #{tpu_custom_call.1} parent=1 // pred_region
      %42 = dma.done [#allocation3], 256
    $region17: #{tpu_custom_call.1} parent=1 // pred_fallthru
      _
    // Predicated region
    $region18: #{tpu_custom_call.1} parent=1 // pred_check
      _
    $region19: #{tpu_custom_call.1} parent=1 // pred_check_branch
      %44 = sbr.rel (0) target = $region21
    $region20: #{tpu_custom_call.1} parent=1 // pred_region
      %46 = dma.done [#allocation6], 2048
    $region21: #{tpu_custom_call.1} parent=1 // pred_fallthru
      _
    %v47 = vld [vmem:[#allocation2] sm:$0xff]
    %v48 = vld [vmem:[#allocation2 + $0x8] sm:$0xff]
    %v49 = vld [vmem:[#allocation5] sm:$0xff]
    %v50 = vld [vmem:[#allocation5 + $0x8] sm:$0xff]
    %v51 = vld [vmem:[#allocation5 + $0x10] sm:$0xff]
    %v52 = vld [vmem:[#allocation5 + $0x18] sm:$0xff]
    %v53 = vld [vmem:[#allocation5 + $0x20] sm:$0xff]
    %v54 = vld [vmem:[#allocation5 + $0x28] sm:$0xff]
    %v55 = vld [vmem:[#allocation5 + $0x30] sm:$0xff]
    %v56 = vld [vmem:[#allocation5 + $0x38] sm:$0xff]
    %v57 = vld [vmem:[#allocation5 + $0x40] sm:$0xff]
    %v58 = vld [vmem:[#allocation5 + $0x48] sm:$0xff]
    %v59 = vld [vmem:[#allocation5 + $0x50] sm:$0xff]
    %v60 = vld [vmem:[#allocation5 + $0x58] sm:$0xff]
    %v61 = vld [vmem:[#allocation5 + $0x60] sm:$0xff]
    %v62 = vld [vmem:[#allocation5 + $0x68] sm:$0xff]
    %v63 = vld [vmem:[#allocation5 + $0x70] sm:$0xff]
    %v64 = vld [vmem:[#allocation5 + $0x78] sm:$0xff]
    %v65 = vld [vmem:[%s2] sm:$0x1]
    %v67 = vperm.slane %v65, 0
    %69 = vmatpush.msra.mxu0 %v64
    %70 = vmatpush.msra.mxu0 %v63
    %71 = vmatpush.msra.mxu0 %v62
    %72 = vmatpush.msra.mxu0 %v61
    %73 = vmatpush.msra.mxu0 %v60
    %74 = vmatpush.msra.mxu0 %v59
    %75 = vmatpush.msra.mxu0 %v58
    %76 = vmatpush.msra.mxu0 %v57
    %77 = vmatpush.msra.mxu0 %v56
    %78 = vmatpush.msra.mxu0 %v55
    %79 = vmatpush.msra.mxu0 %v54
    %80 = vmatpush.msra.mxu0 %v53
    %81 = vmatpush.msra.mxu0 %v52
    %82 = vmatpush.msra.mxu0 %v51
    %83 = vmatpush.msra.mxu0 %v50
    %84 = vmatpush.msra.mxu0 %v49
    %85 = vmatmul.f32.gmra.mxu0 %v47
    %v86 = vpop.f32.mrf.mxu0
    %v87 = vadd.f32 %v67, %v86
    %88 = vmatmul.f32.gmra.mxu0 %v48
    %v89 = vpop.f32.mrf.mxu0
    %v90 = vadd.f32 %v67, %v89
    %91 = vdwg.mxu0
    %92 = vst [vmem:[#allocation7] sm:$0xff] %v87
    %93 = vst [vmem:[#allocation7 + $0x8] sm:$0xff] %v90
    // Predicated region
    $region22: #{tpu_custom_call.1} parent=1 // pred_check
      _
    $region23: #{tpu_custom_call.1} parent=1 // pred_check_branch
      %95 = sbr.rel (0) target = $region25
    $region24: #{tpu_custom_call.1} parent=1 // pred_region
      %97 = vsyncadd [#allocation4], 0
      %s98 = sshll.u32 [#allocation7], 4
      %s99 = int_to_ptr.vmem [resolvable:$true] %s98
      %s100 = sshll.u32 %s3, 4
      %s101 = int_to_ptr.hbm [resolvable:$true] %s100
      %106 = dma.vmem_to_hbm [thread:$0]  %s99, 256, %s101, [#allocation4], 128, 128, 8
    $region25: #{tpu_custom_call.1} parent=1 // pred_fallthru
      _
    // Predicated region
    $region26: #{tpu_custom_call.1} parent=1 // pred_check
      _
    $region27: #{tpu_custom_call.1} parent=1 // pred_check_branch
      %108 = sbr.rel (0) target = $region29
    $region28: #{tpu_custom_call.1} parent=1 // pred_region
      %110 = dma.done [#allocation4], 256
    $region29: #{tpu_custom_call.1} parent=1 // pred_fallthru
      _
    %111 = vsyncpa [#allocation3], 1
    %112 = vsyncpa [#allocation6], 1
    %113 = vsyncpa [#allocation4], 1

</llo_original>
